<compile_context>
chip_gen: v5e
topology: v5e:2x2
jax: 0.10.0
libtpu: 0.0.40
codegen_flags: <defaults>
</compile_context>

<pallas_src>
import functools

import jax
import jax.numpy as jnp
from jax.experimental import pallas as pl
from jax.experimental.pallas import tpu as pltpu

NUM_INPUTS = 50
HIDDEN1 = 30
HIDDEN2 = 20
NUM_OUTPUTS = 3

LANE = 128          # hidden (K/N) dims padded to the lane width
OUT_PAD = 8         # output columns padded only to 8 (block last dim == array last dim)
SUBLANE = 8         # sublane granularity for the batch tile
DEFAULT_TILE_B = 2048


def _round_up(n, m):
    return ((n + m - 1) // m) * m


def mlp_kernel(x_ref, w1_ref, b1_ref, w2_ref, b2_ref, w3_ref, b3_ref, o_ref):
    # Three fused MXU matmuls (bf16 operands, f32 accumulation) + f32 bias/ReLU epilogue.
    x = x_ref[...].astype(jnp.bfloat16)
    h1 = jnp.dot(x, w1_ref[...], preferred_element_type=jnp.float32) + b1_ref[...]
    h1 = jnp.maximum(h1, 0.0)
    h2 = jnp.dot(h1.astype(jnp.bfloat16), w2_ref[...],
                 preferred_element_type=jnp.float32) + b2_ref[...]
    h2 = jnp.maximum(h2, 0.0)
    out = jnp.dot(h2.astype(jnp.bfloat16), w3_ref[...],
                  preferred_element_type=jnp.float32) + b3_ref[...]
    o_ref[...] = out.astype(o_ref.dtype)


def prepare_params(params):
    """One-time: zero-pad to aligned shapes and cast weights to bf16 (hoisted out of forward)."""
    w1, b1, w2, b2, w3, b3 = params

    def pad2(a, rows, cols, dtype):
        out = jnp.zeros((rows, cols), dtype)
        return out.at[: a.shape[0], : a.shape[1]].set(a.astype(dtype))

    w1p = pad2(w1, NUM_INPUTS, LANE, jnp.bfloat16)   # (50, 128)
    b1p = pad2(b1, 1, LANE, jnp.float32)             # (1, 128)
    w2p = pad2(w2, LANE, LANE, jnp.bfloat16)         # (128, 128)
    b2p = pad2(b2, 1, LANE, jnp.float32)             # (1, 128)
    w3p = pad2(w3, LANE, OUT_PAD, jnp.bfloat16)      # (128, 8)
    b3p = pad2(b3, 1, OUT_PAD, jnp.float32)          # (1, 8)
    return w1p, b1p, w2p, b2p, w3p, b3p


@functools.partial(jax.jit, static_argnames=("tile_b",))
def neural_network_forward(x, padded_params, *, tile_b=DEFAULT_TILE_B):
    batch = x.shape[0]
    w1p, b1p, w2p, b2p, w3p, b3p = padded_params

    # Batch tile: multiple of 8 sublanes, no larger than needed for this batch.
    tile_b = min(tile_b, _round_up(batch, SUBLANE))
    tile_b = _round_up(tile_b, SUBLANE)
    # Ragged tail tile: out-of-bounds reads are padded (garbage rows are row-independent
    # and never read back), out-of-bounds writes are clipped -> no host-side x pad copy.
    grid = (pl.cdiv(batch, tile_b),)

    # Advisory cost estimate reflecting the bytes this kernel actually moves.
    x_bytes = batch * NUM_INPUTS * x.dtype.itemsize
    weight_bytes = sum(int(a.size) * a.dtype.itemsize
                       for a in (w1p, b1p, w2p, b2p, w3p, b3p))
    out_bytes = batch * OUT_PAD * 4
    flops = 2 * batch * (NUM_INPUTS * LANE + LANE * LANE + LANE * OUT_PAD)

    const_map = lambda i: (0, 0)   # weights/biases: same block every step -> VMEM-resident

    out_padded = pl.pallas_call(
        mlp_kernel,
        out_shape=jax.ShapeDtypeStruct((batch, OUT_PAD), jnp.float32),
        grid=grid,
        in_specs=[
            pl.BlockSpec((tile_b, NUM_INPUTS), lambda i: (i, 0)),   # x: streamed per tile
            pl.BlockSpec((NUM_INPUTS, LANE), const_map),            # w1 (bf16)
            pl.BlockSpec((1, LANE), const_map),                     # b1 (f32)
            pl.BlockSpec((LANE, LANE), const_map),                  # w2 (bf16)
            pl.BlockSpec((1, LANE), const_map),                     # b2 (f32)
            pl.BlockSpec((LANE, OUT_PAD), const_map),               # w3 (bf16)
            pl.BlockSpec((1, OUT_PAD), const_map),                  # b3 (f32)
        ],
        out_specs=pl.BlockSpec((tile_b, OUT_PAD), lambda i: (i, 0)),  # slim 8-lane output
        compiler_params=pltpu.CompilerParams(
            # On v7x, if profiling shows the batch axis is not split across both
            # TensorCores, switch this axis to pltpu.CORE_PARALLEL.
            dimension_semantics=("parallel",),
        ),
        cost_estimate=pl.CostEstimate(
            flops=flops, transcendentals=0,
            bytes_accessed=x_bytes + weight_bytes + out_bytes,
        ),
    )(x, w1p, b1p, w2p, b2p, w3p, b3p)

    return out_padded[:, :NUM_OUTPUTS]


def init_params(key):
    """Deterministic init mimicking PyTorch's default Linear init U[-1/sqrt(fan_in), 1/sqrt(fan_in)]."""
    def linear(key, fan_in, fan_out):
        kw, kb = jax.random.split(key)
        bound = 1.0 / jnp.sqrt(jnp.float32(fan_in))
        # Stored as [in, out] so the kernel computes x @ W + b.
        w = jax.random.uniform(kw, (fan_in, fan_out), jnp.float32, -bound, bound)
        b = jax.random.uniform(kb, (1, fan_out), jnp.float32, -bound, bound)
        return w, b

    k1, k2, k3 = jax.random.split(key, 3)
    w1, b1 = linear(k1, NUM_INPUTS, HIDDEN1)
    w2, b2 = linear(k2, HIDDEN1, HIDDEN2)
    w3, b3 = linear(k3, HIDDEN2, NUM_OUTPUTS)
    return (w1, b1, w2, b2, w3, b3)


def reference_forward(x, params):
    w1, b1, w2, b2, w3, b3 = params
    h1 = jnp.maximum(x @ w1 + b1, 0.0)
    h2 = jnp.maximum(h1 @ w2 + b2, 0.0)
    return h2 @ w3 + b3


if __name__ == "__main__":
    key = jax.random.PRNGKey(0)
    k_params, k_x1, k_x2 = jax.random.split(key, 3)

    params = init_params(k_params)
    # Padding/casting hoisted out of the per-call path: done once here.
    padded_params = jax.block_until_ready(prepare_params(params))

    # Small-batch check (the module is used as x = torch.rand((1, 50)); use batch=2).
    x_small = jax.random.uniform(k_x1, (2, NUM_INPUTS), jnp.float32)
    out_small = jax.block_until_ready(neural_network_forward(x_small, padded_params))
    ref_small = reference_forward(x_small, params)
    assert out_small.shape == (2, NUM_OUTPUTS)
    assert jnp.allclose(out_small, ref_small, atol=3e-2, rtol=3e-2)  # bf16 operands, f32 acc

    # Ragged multi-row check: exercises the cdiv grid tail clipping and resident weights.
    x_big = jax.random.uniform(k_x2, (1037, NUM_INPUTS), jnp.float32)
    out_big = jax.block_until_ready(neural_network_forward(x_big, padded_params))
    ref_big = reference_forward(x_big, params)
    assert out_big.shape == (1037, NUM_OUTPUTS)
    assert jnp.allclose(out_big, ref_big, atol=3e-2, rtol=3e-2)

    print("KERNEL_OK")
</pallas_src>

<mosaic_0001>
module attributes {stable_mosaic.version = 11 : i64} {
  func.func @mlp_kernel(%arg0: i32, %arg1: memref<8x50xf32, #tpu.memory_space<vmem>>, %arg2: memref<50x128xbf16, #tpu.memory_space<vmem>>, %arg3: memref<1x128xf32, #tpu.memory_space<vmem>>, %arg4: memref<128x128xbf16, #tpu.memory_space<vmem>>, %arg5: memref<1x128xf32, #tpu.memory_space<vmem>>, %arg6: memref<128x8xbf16, #tpu.memory_space<vmem>>, %arg7: memref<1x8xf32, #tpu.memory_space<vmem>>, %arg8: memref<8x8xf32, #tpu.memory_space<vmem>>) attributes {dimension_semantics = [#tpu.dimension_semantics<parallel>], iteration_bounds = array<i64: 1>, scalar_prefetch = 0 : i64, scratch_operands = 0 : i64, tpu.core_type = #tpu.core_type<tc>, window_params = [{transform_indices = @transform_0, window_bounds = array<i64: 8, 50>}, {pipeline_mode = #tpu.pipeline_mode<synchronous>, transform_indices = @transform_1, window_bounds = array<i64: 50, 128>}, {pipeline_mode = #tpu.pipeline_mode<synchronous>, transform_indices = @transform_2, window_bounds = array<i64: 1, 128>}, {pipeline_mode = #tpu.pipeline_mode<synchronous>, transform_indices = @transform_3, window_bounds = array<i64: 128, 128>}, {pipeline_mode = #tpu.pipeline_mode<synchronous>, transform_indices = @transform_4, window_bounds = array<i64: 1, 128>}, {pipeline_mode = #tpu.pipeline_mode<synchronous>, transform_indices = @transform_5, window_bounds = array<i64: 128, 8>}, {pipeline_mode = #tpu.pipeline_mode<synchronous>, transform_indices = @transform_6, window_bounds = array<i64: 1, 8>}, {transform_indices = @transform_7, window_bounds = array<i64: 8, 8>}]} {
    %c0 = arith.constant 0 : index
    %c0_0 = arith.constant 0 : index
    %0 = vector.load %arg1[%c0, %c0_0] : memref<8x50xf32, #tpu.memory_space<vmem>>, vector<8x50xf32>
    %1 = arith.truncf %0 : vector<8x50xf32> to vector<8x50xbf16>
    %c0_1 = arith.constant 0 : index
    %c0_2 = arith.constant 0 : index
    %2 = vector.load %arg2[%c0_1, %c0_2] : memref<50x128xbf16, #tpu.memory_space<vmem>>, vector<50x128xbf16>
    %cst = arith.constant dense<0.000000e+00> : vector<8x128xf32>
    %3 = tpu.matmul %1, %2, %cst {dimension_numbers = #tpu.dot_dimension_numbers<[1], [0], [0], [1], [0, 0, 1, 1], [], []>} : vector<8x50xbf16>, vector<50x128xbf16>, vector<8x128xf32> -> vector<8x128xf32>
    %c0_3 = arith.constant 0 : index
    %c0_4 = arith.constant 0 : index
    %4 = vector.load %arg3[%c0_3, %c0_4] : memref<1x128xf32, #tpu.memory_space<vmem>>, vector<1x128xf32>
    %5 = vector.broadcast %4 : vector<1x128xf32> to vector<8x128xf32>
    %6 = arith.addf %3, %5 : vector<8x128xf32>
    %cst_5 = arith.constant 0.000000e+00 : f32
    %7 = vector.broadcast %cst_5 : f32 to vector<8x128xf32>
    %8 = arith.maximumf %6, %7 : vector<8x128xf32>
    %9 = arith.truncf %8 : vector<8x128xf32> to vector<8x128xbf16>
    %c0_6 = arith.constant 0 : index
    %c0_7 = arith.constant 0 : index
    %10 = vector.load %arg4[%c0_6, %c0_7] : memref<128x128xbf16, #tpu.memory_space<vmem>>, vector<128x128xbf16>
    %cst_8 = arith.constant dense<0.000000e+00> : vector<8x128xf32>
    %11 = tpu.matmul %9, %10, %cst_8 {dimension_numbers = #tpu.dot_dimension_numbers<[1], [0], [0], [1], [0, 0, 1, 1], [], []>} : vector<8x128xbf16>, vector<128x128xbf16>, vector<8x128xf32> -> vector<8x128xf32>
    %c0_9 = arith.constant 0 : index
    %c0_10 = arith.constant 0 : index
    %12 = vector.load %arg5[%c0_9, %c0_10] : memref<1x128xf32, #tpu.memory_space<vmem>>, vector<1x128xf32>
    %13 = vector.broadcast %12 : vector<1x128xf32> to vector<8x128xf32>
    %14 = arith.addf %11, %13 : vector<8x128xf32>
    %cst_11 = arith.constant 0.000000e+00 : f32
    %15 = vector.broadcast %cst_11 : f32 to vector<8x128xf32>
    %16 = arith.maximumf %14, %15 : vector<8x128xf32>
    %17 = arith.truncf %16 : vector<8x128xf32> to vector<8x128xbf16>
    %c0_12 = arith.constant 0 : index
    %c0_13 = arith.constant 0 : index
    %18 = vector.load %arg6[%c0_12, %c0_13] : memref<128x8xbf16, #tpu.memory_space<vmem>>, vector<128x8xbf16>
    %cst_14 = arith.constant dense<0.000000e+00> : vector<8x8xf32>
    %19 = tpu.matmul %17, %18, %cst_14 {dimension_numbers = #tpu.dot_dimension_numbers<[1], [0], [0], [1], [0, 0, 1, 1], [], []>} : vector<8x128xbf16>, vector<128x8xbf16>, vector<8x8xf32> -> vector<8x8xf32>
    %c0_15 = arith.constant 0 : index
    %c0_16 = arith.constant 0 : index
    %20 = vector.load %arg7[%c0_15, %c0_16] : memref<1x8xf32, #tpu.memory_space<vmem>>, vector<1x8xf32>
    %21 = vector.broadcast %20 : vector<1x8xf32> to vector<8x8xf32>
    %22 = arith.addf %19, %21 : vector<8x8xf32>
    %c0_17 = arith.constant 0 : index
    %c0_18 = arith.constant 0 : index
    %23 = vector.load %arg8[%c0_17, %c0_18] : memref<8x8xf32, #tpu.memory_space<vmem>>, vector<8x8xf32>
    tpu.vector_store %arg8[%c0_17, %c0_18], %22 {strides = array<i32>} : memref<8x8xf32, #tpu.memory_space<vmem>>, vector<8x8xf32>,
    return
  }
  func.func @transform_0(%arg0: i32) -> (i32, i32) {
    %c0_i32 = arith.constant 0 : i32
    %c0_i32_0 = arith.constant 0 : i32
    return %arg0, %c0_i32 : i32, i32
  }
  func.func @transform_1(%arg0: i32) -> (i32, i32) {
    %c0_i32 = arith.constant 0 : i32
    %c0_i32_0 = arith.constant 0 : i32
    %c0_i32_1 = arith.constant 0 : i32
    return %c0_i32, %c0_i32_0 : i32, i32
  }
  func.func @transform_2(%arg0: i32) -> (i32, i32) {
    %c0_i32 = arith.constant 0 : i32
    %c0_i32_0 = arith.constant 0 : i32
    %c0_i32_1 = arith.constant 0 : i32
    return %c0_i32, %c0_i32_0 : i32, i32
  }
  func.func @transform_3(%arg0: i32) -> (i32, i32) {
    %c0_i32 = arith.constant 0 : i32
    %c0_i32_0 = arith.constant 0 : i32
    %c0_i32_1 = arith.constant 0 : i32
    return %c0_i32, %c0_i32_0 : i32, i32
  }
  func.func @transform_4(%arg0: i32) -> (i32, i32) {
    %c0_i32 = arith.constant 0 : i32
    %c0_i32_0 = arith.constant 0 : i32
    %c0_i32_1 = arith.constant 0 : i32
    return %c0_i32, %c0_i32_0 : i32, i32
  }
  func.func @transform_5(%arg0: i32) -> (i32, i32) {
    %c0_i32 = arith.constant 0 : i32
    %c0_i32_0 = arith.constant 0 : i32
    %c0_i32_1 = arith.constant 0 : i32
    return %c0_i32, %c0_i32_0 : i32, i32
  }
  func.func @transform_6(%arg0: i32) -> (i32, i32) {
    %c0_i32 = arith.constant 0 : i32
    %c0_i32_0 = arith.constant 0 : i32
    %c0_i32_1 = arith.constant 0 : i32
    return %c0_i32, %c0_i32_0 : i32, i32
  }
  func.func @transform_7(%arg0: i32) -> (i32, i32) {
    %c0_i32 = arith.constant 0 : i32
    %c0_i32_0 = arith.constant 0 : i32
    return %arg0, %c0_i32 : i32, i32
  }
}

</mosaic_0001>

<llo_original>
// kernel: neural_network_forward.1
$region0: #{neural_network_forward.1}
  #allocation0 [shape = 'u32[]', space=smem, size = 0x4, offset = 0x4, fixed_abs, tag = 'smem constant byte address 0x4 - core index']
  #allocation1 [shape = 'u32[72,128]{1,0:T(1,128)}', space=vmem, size = 0x9000, scoped, tag = 'internal scratch']
  %s0 = inlined_call_operand.vmem [shape: f32[2,50], index: 0, kind: input, shape index: {}]
  %s1 = inlined_call_operand.hbm [shape: bf16[50,128], index: 1, kind: input, shape index: {}]
  %s2 = inlined_call_operand.vmem [shape: f32[1,128], index: 2, kind: input, shape index: {}]
  %s3 = inlined_call_operand.vmem [shape: bf16[128,128], index: 3, kind: input, shape index: {}]
  %s4 = inlined_call_operand.vmem [shape: f32[1,128], index: 4, kind: input, shape index: {}]
  %s5 = inlined_call_operand.vmem [shape: bf16[128,8], index: 5, kind: input, shape index: {}]
  %s6 = inlined_call_operand.vmem [shape: f32[1,8], index: 6, kind: input, shape index: {}]
  %s7 = inlined_call_operand.hbm [shape: f32[2,8], index: 7, kind: output, shape index: {}]
  %s8 = sld [smem:[#allocation0]]
  $region42: #{neural_network_forward.1} parent=0
    _
  %s10 = ssub.s32 1, %s8
  %s11 = scalar_select 0, %s10, %s8
  $region1: #{neural_network_forward.1} parent=0
    #allocation2 [shape = 'u8[14336]{0}', space=vmem, size = 0x3800, scoped, tag = 'input window, operand 1, single buffered']
    #allocation3 [shape = 's32[1]{0}', space=sflag, size = 0x4, scoped, tag = 'scoped memory for neural_network_forward.1']
    #allocation4 [shape = 's32[1]{0}', space=sflag, size = 0x4, scoped, tag = 'scoped memory for neural_network_forward.1']
    #allocation5 [shape = 'u8[4096]{0}', space=vmem, size = 0x1000, scoped, tag = 'output window, operand 0, single buffered']
    %12 = vsyncpa [#allocation3], 0
    %13 = vsyncpa [#allocation4], 0
    // Predicated region
    $region2: #{neural_network_forward.1} parent=1 // pred_check
      _
    $region3: #{neural_network_forward.1} parent=1 // pred_check_branch
      %15 = sbr.rel (0) target = $region5
    $region4: #{neural_network_forward.1} parent=1 // pred_region
      _
    $region5: #{neural_network_forward.1} parent=1 // pred_fallthru
      _
    // Predicated region
    $region6: #{neural_network_forward.1} parent=1 // pred_check
      _
    $region7: #{neural_network_forward.1} parent=1 // pred_check_branch
      %17 = sbr.rel (0) target = $region9
    $region8: #{neural_network_forward.1} parent=1 // pred_region
      %19 = vsyncadd [#allocation3], 0
      %s20 = sshll.u32 %s1, 4
      %s21 = int_to_ptr.hbm [resolvable:$true] %s20
      %s22 = sshll.u32 [#allocation2], 4
      %s23 = int_to_ptr.vmem [resolvable:$true] %s22
      %28 = dma.hbm_to_vmem [thread:$0]  %s21, 448, %s23, [#allocation3], 64, 64, 4
    $region9: #{neural_network_forward.1} parent=1 // pred_fallthru
      _
    // Predicated region
    $region10: #{neural_network_forward.1} parent=1 // pred_check
      _
    $region11: #{neural_network_forward.1} parent=1 // pred_check_branch
      %30 = sbr.rel (0) target = $region13
    $region12: #{neural_network_forward.1} parent=1 // pred_region
      _
    $region13: #{neural_network_forward.1} parent=1 // pred_fallthru
      _
    // Predicated region
    $region14: #{neural_network_forward.1} parent=1 // pred_check
      _
    $region15: #{neural_network_forward.1} parent=1 // pred_check_branch
      %32 = sbr.rel (0) target = $region17
    $region16: #{neural_network_forward.1} parent=1 // pred_region
      _
    $region17: #{neural_network_forward.1} parent=1 // pred_fallthru
      _
    // Predicated region
    $region18: #{neural_network_forward.1} parent=1 // pred_check
      _
    $region19: #{neural_network_forward.1} parent=1 // pred_check_branch
      %34 = sbr.rel (0) target = $region21
    $region20: #{neural_network_forward.1} parent=1 // pred_region
      _
    $region21: #{neural_network_forward.1} parent=1 // pred_fallthru
      _
    // Predicated region
    $region22: #{neural_network_forward.1} parent=1 // pred_check
      _
    $region23: #{neural_network_forward.1} parent=1 // pred_check_branch
      %36 = sbr.rel (0) target = $region25
    $region24: #{neural_network_forward.1} parent=1 // pred_region
      _
    $region25: #{neural_network_forward.1} parent=1 // pred_fallthru
      _
    // Predicated region
    $region26: #{neural_network_forward.1} parent=1 // pred_check
      _
    $region27: #{neural_network_forward.1} parent=1 // pred_check_branch
      %38 = sbr.rel (0) target = $region29
    $region28: #{neural_network_forward.1} parent=1 // pred_region
      _
    $region29: #{neural_network_forward.1} parent=1 // pred_fallthru
      _
    // Predicated region
    $region30: #{neural_network_forward.1} parent=1 // pred_check
      _
    $region31: #{neural_network_forward.1} parent=1 // pred_check_branch
      %40 = sbr.rel (0) target = $region33
    $region32: #{neural_network_forward.1} parent=1 // pred_region
      %42 = dma.done [#allocation3], 448
    $region33: #{neural_network_forward.1} parent=1 // pred_fallthru
      _
    %v44 = vld [vmem:[%s0] sm:$0xff]
    %v45 = vpack.c.bf16 %v44, %v44
    %v46 = vld [vmem:[#allocation2] sm:$0xf]
    %v47 = vld [vmem:[#allocation2 + $0x4] sm:$0xf]
    %v48 = vld [vmem:[#allocation2 + $0x8] sm:$0xf]
    %v49 = vld [vmem:[#allocation2 + $0xc] sm:$0xf]
    %v50 = vld [vmem:[#allocation2 + $0x10] sm:$0xf]
    %v51 = vld [vmem:[#allocation2 + $0x14] sm:$0xf]
    %v52 = vld [vmem:[#allocation2 + $0x18] sm:$0x1]
    %v53 = vld [vmem:[%s2] sm:$0x1]
    %v55 = vperm.slane %v53, 0
    %v64 = vunpack.c.l.b16 %v46
    %v65 = vunpack.c.l.b16 %v47
    %v66 = vunpack.c.l.b16 %v48
    %v67 = vunpack.c.l.b16 %v49
    %v68 = vunpack.c.l.b16 %v50
    %v69 = vunpack.c.l.b16 %v51
    %v70 = vunpack.c.l.b16 %v52
    %v71 = vpack.c.b16 %v65, %v64
    %v72 = vpack.c.b16 %v67, %v66
    %v73 = vpack.c.b16 %v69, %v68
    %v74 = vpack.c.b16 %v70, %v70
    %vm78 = vcmask 408576
    %v80 = vsel %vm78, %v45, 0
    %vm82 = vcmask 1040384
    %v84 = vsel %vm82, %v74, 0
    %86 = vmatpush.bf16.msra.mxu0 0
    %87 = vmatpush.bf16.msra.mxu0 0
    %88 = vmatpush.bf16.msra.mxu0 0
    %89 = vmatpush.bf16.msra.mxu0 0
    %90 = vmatpush.bf16.msra.mxu0 %v84
    %91 = vmatpush.bf16.msra.mxu0 %v73
    %92 = vmatpush.bf16.msra.mxu0 %v72
    %93 = vmatpush.bf16.msra.mxu0 %v71
    %94 = vmatmul.bf16.gmra.mxu0 %v80
    %v95 = vpop.f32.mrf.mxu0
    %v96 = vadd.f32 %v55, %v95
    %v97 = vpop.f32.mrf.mxu0
    %98 = vdwg.mxu0
    %v99 = vmax.f32 %v96, 0.0
    %v100 = vpack.c.bf16 %v99, %v99
    %v101 = vld [vmem:[%s3] sm:$0xf]
    %v102 = vld [vmem:[%s3 + $0x4] sm:$0xf]
    %v103 = vld [vmem:[%s3 + $0x8] sm:$0xf]
    %v104 = vld [vmem:[%s3 + $0xc] sm:$0xf]
    %v105 = vld [vmem:[%s3 + $0x10] sm:$0xf]
    %v106 = vld [vmem:[%s3 + $0x14] sm:$0xf]
    %v107 = vld [vmem:[%s3 + $0x18] sm:$0xf]
    %v108 = vld [vmem:[%s3 + $0x1c] sm:$0xf]
    %v109 = vld [vmem:[%s3 + $0x20] sm:$0xf]
    %v110 = vld [vmem:[%s3 + $0x24] sm:$0xf]
    %v111 = vld [vmem:[%s3 + $0x28] sm:$0xf]
    %v112 = vld [vmem:[%s3 + $0x2c] sm:$0xf]
    %v113 = vld [vmem:[%s3 + $0x30] sm:$0xf]
    %v114 = vld [vmem:[%s3 + $0x34] sm:$0xf]
    %v115 = vld [vmem:[%s3 + $0x38] sm:$0xf]
    %v116 = vld [vmem:[%s3 + $0x3c] sm:$0xf]
    %v117 = vld [vmem:[%s4] sm:$0x1]
    %v119 = vperm.slane %v117, 0
    %v137 = vunpack.c.l.b16 %v101
    %v138 = vunpack.c.l.b16 %v102
    %v139 = vunpack.c.l.b16 %v103
    %v140 = vunpack.c.l.b16 %v104
    %v141 = vunpack.c.l.b16 %v105
    %v142 = vunpack.c.l.b16 %v106
    %v143 = vunpack.c.l.b16 %v107
    %v144 = vunpack.c.l.b16 %v108
    %v145 = vunpack.c.l.b16 %v109
    %v146 = vunpack.c.l.b16 %v110
    %v147 = vunpack.c.l.b16 %v111
    %v148 = vunpack.c.l.b16 %v112
    %v149 = vunpack.c.l.b16 %v113
    %v150 = vunpack.c.l.b16 %v114
    %v151 = vunpack.c.l.b16 %v115
    %v152 = vunpack.c.l.b16 %v116
    %v153 = vpack.c.b16 %v138, %v137
    %v154 = vpack.c.b16 %v140, %v139
    %v155 = vpack.c.b16 %v142, %v141
    %v156 = vpack.c.b16 %v144, %v143
    %v157 = vpack.c.b16 %v146, %v145
    %v158 = vpack.c.b16 %v148, %v147
    %v159 = vpack.c.b16 %v150, %v149
    %v160 = vpack.c.b16 %v152, %v151
    %169 = vmatpush.bf16.msra.mxu0 %v160
    %170 = vmatpush.bf16.msra.mxu0 %v159
    %171 = vmatpush.bf16.msra.mxu0 %v158
    %172 = vmatpush.bf16.msra.mxu0 %v157
    %173 = vmatpush.bf16.msra.mxu0 %v156
    %174 = vmatpush.bf16.msra.mxu0 %v155
    %175 = vmatpush.bf16.msra.mxu0 %v154
    %176 = vmatpush.bf16.msra.mxu0 %v153
    %177 = vmatmul.bf16.gmra.mxu0 %v100
    %v178 = vpop.f32.mrf.mxu0
    %v179 = vadd.f32 %v119, %v178
    %v180 = vpop.f32.mrf.mxu0
    %181 = vdwg.mxu0
    %v182 = vmax.f32 %v179, 0.0
    %v183 = vpack.c.bf16 %v182, %v182
    %v184 = vld [vmem:[%s5] sm:$0xf]
    %v185 = vld [vmem:[%s5 + $0x4] sm:$0xf]
    %v186 = vld [vmem:[%s5 + $0x8] sm:$0xf]
    %v187 = vld [vmem:[%s5 + $0xc] sm:$0xf]
    %v188 = vld [vmem:[%s5 + $0x10] sm:$0xf]
    %v189 = vld [vmem:[%s5 + $0x14] sm:$0xf]
    %v190 = vld [vmem:[%s5 + $0x18] sm:$0xf]
    %v191 = vld [vmem:[%s5 + $0x1c] sm:$0xf]
    %v192 = vld [vmem:[%s5 + $0x20] sm:$0xf]
    %v193 = vld [vmem:[%s5 + $0x24] sm:$0xf]
    %v194 = vld [vmem:[%s5 + $0x28] sm:$0xf]
    %v195 = vld [vmem:[%s5 + $0x2c] sm:$0xf]
    %v196 = vld [vmem:[%s5 + $0x30] sm:$0xf]
    %v197 = vld [vmem:[%s5 + $0x34] sm:$0xf]
    %v198 = vld [vmem:[%s5 + $0x38] sm:$0xf]
    %v199 = vld [vmem:[%s5 + $0x3c] sm:$0xf]
    %v200 = vld [vmem:[%s6] sm:$0x1]
    %v202 = vperm.slane %v200, 0
    %v220 = vunpack.c.l.b16 %v184
    %v221 = vunpack.c.l.b16 %v185
    %v222 = vunpack.c.l.b16 %v186
    %v223 = vunpack.c.l.b16 %v187
    %v224 = vunpack.c.l.b16 %v188
    %v225 = vunpack.c.l.b16 %v189
    %v226 = vunpack.c.l.b16 %v190
    %v227 = vunpack.c.l.b16 %v191
    %v228 = vunpack.c.l.b16 %v192
    %v229 = vunpack.c.l.b16 %v193
    %v230 = vunpack.c.l.b16 %v194
    %v231 = vunpack.c.l.b16 %v195
    %v232 = vunpack.c.l.b16 %v196
    %v233 = vunpack.c.l.b16 %v197
    %v234 = vunpack.c.l.b16 %v198
    %v235 = vunpack.c.l.b16 %v199
    %v236 = vpack.c.b16 %v221, %v220
    %v237 = vpack.c.b16 %v223, %v222
    %v238 = vpack.c.b16 %v225, %v224
    %v239 = vpack.c.b16 %v227, %v226
    %v240 = vpack.c.b16 %v229, %v228
    %v241 = vpack.c.b16 %v231, %v230
    %v242 = vpack.c.b16 %v233, %v232
    %v243 = vpack.c.b16 %v235, %v234
    %252 = vmatpush.bf16.msra.mxu0 %v243
    %253 = vmatpush.bf16.msra.mxu0 %v242
    %254 = vmatpush.bf16.msra.mxu0 %v241
    %255 = vmatpush.bf16.msra.mxu0 %v240
    %256 = vmatpush.bf16.msra.mxu0 %v239
    %257 = vmatpush.bf16.msra.mxu0 %v238
    %258 = vmatpush.bf16.msra.mxu0 %v237
    %259 = vmatpush.bf16.msra.mxu0 %v236
    %260 = vmatmul.bf16.gmra.mxu0 %v183
    %v261 = vpop.f32.mrf.mxu0
    %v262 = vadd.f32 %v202, %v261
    %v263 = vpop.f32.mrf.mxu0
    %264 = vdwg.mxu0
    %vm265 = vcmask 64512
    %266 = vst.msk [vmem:[#allocation5] sm:$0xff] %vm265, %v262
    // Predicated region
    $region34: #{neural_network_forward.1} parent=1 // pred_check
      _
    $region35: #{neural_network_forward.1} parent=1 // pred_check_branch
      %268 = sbr.rel (0) target = $region37
    $region36: #{neural_network_forward.1} parent=1 // pred_region
      %270 = vsyncadd [#allocation4], 96
      %s271 = sshll.u32 [#allocation5], 4
      %s272 = int_to_ptr.vmem [resolvable:$true] %s271
      %s273 = sshll.u32 %s7, 4
      %s274 = int_to_ptr.hbm [resolvable:$true] %s273
      %279 = dma.vmem_to_hbm [thread:$0]  %s272, 32, %s274, [#allocation4], 32, 32, 2
    $region37: #{neural_network_forward.1} parent=1 // pred_fallthru
      _
    // Predicated region
    $region38: #{neural_network_forward.1} parent=1 // pred_check
      _
    $region39: #{neural_network_forward.1} parent=1 // pred_check_branch
      %281 = sbr.rel (0) target = $region41
    $region40: #{neural_network_forward.1} parent=1 // pred_region
      %283 = dma.done [#allocation4], 128
    $region41: #{neural_network_forward.1} parent=1 // pred_fallthru
      _
    %284 = vsyncpa [#allocation3], 1
    %285 = vsyncpa [#allocation4], 1

</llo_original>
